<compile_context>
chip_gen: v7x
topology: tpu7x:2x2x1
jax: 0.10.0
libtpu: 0.0.40
codegen_flags: <defaults>
</compile_context>

<pallas_src>
import functools
import math

import jax
import jax.numpy as jnp
from jax.experimental import pallas as pl
from jax.experimental.pallas import tpu as pltpu


def _round_up(x, m):
    return ((x + m - 1) // m) * m


# ------------------------------- kernels ------------------------------------

def _split_kernel(t_ref, freqs_ref, out_ref, *, half):
    # Fast path (half % 128 == 0): one half-width multiply, one sin, one cos,
    # two unmasked lane-dense stores.
    # t_ref: (TB, 1) f32, freqs_ref: (1, half) f32, out_ref: (TB, dim)
    arg = t_ref[...] * freqs_ref[...]                   # (TB, half), same bits as ref
    out_ref[:, :half] = jnp.sin(arg).astype(out_ref.dtype)
    out_ref[:, half:] = jnp.cos(arg).astype(out_ref.dtype)


def _select_kernel(t_ref, freqs_ref, iscos_ref, out_ref):
    # Fallback path (half % 128 != 0): full-width compute + select, single
    # full-width store.  freqs_ref holds freqs repeated over both halves.
    arg = t_ref[...] * freqs_ref[...]                   # (TB, dim)
    is_cos = iscos_ref[...] != 0                        # (1, dim) bool
    out = jnp.where(is_cos, jnp.cos(arg), jnp.sin(arg))
    out_ref[...] = out.astype(out_ref.dtype)


# ------------------------------- wrapper ------------------------------------

def sinusoidal_time_emb_reference(t, dim):
    """Pure-JAX reference, identical to the PyTorch module's forward."""
    half = dim // 2
    scale = math.log(10000.0) / (half - 1)
    freqs = jnp.exp(jnp.arange(half, dtype=jnp.float32) * -scale)
    emb = t.astype(jnp.float32)[:, None] * freqs[None, :]
    return jnp.concatenate([jnp.sin(emb), jnp.cos(emb)], axis=-1)


def sinusoidal_time_emb(t, dim, *, block_rows=1024, out_dtype=jnp.float32,
                        min_pallas_bytes=1 << 20):
    """t: (B,) timesteps -> (B, dim) embedding laid out as [sin half | cos half]."""
    assert dim % 2 == 0, "dim must be even"
    assert dim >= 4, "dim must be >= 4 (half - 1 == 0 would divide by zero)"
    assert t.ndim == 1, "t must be a 1-D batch of timesteps"

    B = int(t.shape[0])
    half = dim // 2
    bytes_out = jnp.dtype(out_dtype).itemsize

    # Small shapes: custom-call launch overhead rivals the HBM time; let XLA
    # fuse the elementwise sin/cos chain into neighboring ops instead.
    if B * dim * bytes_out < min_pallas_bytes:
        return sinusoidal_time_emb_reference(t, dim).astype(out_dtype)

    # --- hoisted constants (computed once in the wrapper, resident in VMEM) ---
    scale = math.log(10000.0) / (half - 1)
    freqs = jnp.exp(jnp.arange(half, dtype=jnp.float32) * -scale)       # (half,)
    t2d = t.astype(jnp.float32).reshape(B, 1)

    # Sublane row alignment for non-full-array blocks: 8 rows for f32, 16 for bf16.
    rows_align = max(8, 32 // bytes_out)

    # Cap the per-block VMEM footprint (double-buffered output + lane-padded t
    # blocks) to ~12 MiB: fits v5e's 16 MiB and v7x's 32 MiB default scoped VMEM.
    vmem_budget = 12 * 1024 * 1024
    per_row_bytes = 2 * (dim * bytes_out + 128 * 4)
    tb_cap = max(rows_align, (vmem_budget // per_row_bytes) // rows_align * rows_align)
    block_rows = max(rows_align, min(block_rows, tb_cap))

    if B < 2 * rows_align:
        # Tiny batch: single full-array block (block == array dims is always legal).
        tb, n_blocks = B, 1
    else:
        # >= 2 blocks so dimension_semantics=("parallel",) can shard the batch
        # axis across v7x's two TensorCores.  tb is row-aligned and the final
        # block may be partial (masked by the pipeline) -> no pad, no slice.
        n_blocks = max(2, pl.cdiv(B, block_rows))
        tb = _round_up(pl.cdiv(B, n_blocks), rows_align)
        n_blocks = pl.cdiv(B, tb)

    t_spec = pl.BlockSpec((tb, 1), lambda i: (i, 0))
    out_spec = pl.BlockSpec((tb, dim), lambda i: (i, 0))

    if half % 128 == 0:
        # Half-width sin/cos, two unmasked lane-dense stores.
        kernel = functools.partial(_split_kernel, half=half)
        in_specs = [t_spec, pl.BlockSpec((1, half), lambda i: (0, 0))]
        operands = (t2d, freqs.reshape(1, half))
        transcendentals = B * dim                      # B*half sin + B*half cos
    else:
        # Full-width compute + select (still bit-identical sin/cos arguments).
        freqs_full = jnp.concatenate([freqs, freqs]).reshape(1, dim)     # (1, dim)
        is_cos = (jnp.arange(dim, dtype=jnp.int32) >= half).astype(jnp.int32)
        is_cos = is_cos.reshape(1, dim)                                  # (1, dim)
        kernel = _select_kernel
        in_specs = [t_spec,
                    pl.BlockSpec((1, dim), lambda i: (0, 0)),
                    pl.BlockSpec((1, dim), lambda i: (0, 0))]
        operands = (t2d, freqs_full, is_cos)
        transcendentals = 2 * B * dim

    cost = pl.CostEstimate(
        flops=2 * B * dim,
        transcendentals=transcendentals,
        bytes_accessed=B * dim * bytes_out + 4 * B + 8 * dim,
    )

    return pl.pallas_call(
        kernel,
        out_shape=jax.ShapeDtypeStruct((B, dim), out_dtype),
        grid=(n_blocks,),
        in_specs=in_specs,
        out_specs=out_spec,
        compiler_params=pltpu.CompilerParams(
            dimension_semantics=("parallel",),
        ),
        cost_estimate=cost,
    )(*operands)


# --------------------------------- tests -------------------------------------

if __name__ == "__main__":
    key = jax.random.PRNGKey(0)
    k_small, k_large, k_tiny = jax.random.split(key, 3)

    # 1) Small diffusion-model-like shape, forced through the Pallas select
    #    path (half < 128), single full-array block.
    B, dim = 8, 32
    t = jax.random.uniform(k_small, (B,), jnp.float32, 0.0, 1000.0)
    out = jax.block_until_ready(sinusoidal_time_emb(t, dim, min_pallas_bytes=0))
    ref = sinusoidal_time_emb_reference(t, dim)
    assert out.shape == (B, dim)
    assert jnp.allclose(out, ref, atol=1e-5, rtol=1e-5)

    # 2) Larger batch, dim >= 256: split kernel (unmasked half-width stores),
    #    tiled batch grid with a partial final block, no pad / no slice.
    B2, dim2 = 2000, 256
    t2 = jax.random.uniform(k_large, (B2,), jnp.float32, 0.0, 1000.0)
    out2 = jax.block_until_ready(sinusoidal_time_emb(t2, dim2, block_rows=512))
    ref2 = sinusoidal_time_emb_reference(t2, dim2)
    assert out2.shape == (B2, dim2)
    assert jnp.allclose(out2, ref2, atol=1e-5, rtol=1e-5)

    # 3) bf16 output (writeback-bound => ~2x fewer bytes), 16-row-aligned tiles.
    out3 = jax.block_until_ready(
        sinusoidal_time_emb(t2, dim2, out_dtype=jnp.bfloat16, min_pallas_bytes=0))
    assert out3.shape == (B2, dim2) and out3.dtype == jnp.bfloat16
    assert jnp.allclose(out3.astype(jnp.float32), ref2, atol=1e-2, rtol=1e-2)

    # 4) Default small-shape fast path (pure JAX, no pallas_call launch).
    t4 = jax.random.uniform(k_tiny, (16,), jnp.float32, 0.0, 1000.0)
    out4 = jax.block_until_ready(sinusoidal_time_emb(t4, 64))
    assert jnp.allclose(out4, sinusoidal_time_emb_reference(t4, 64),
                        atol=1e-5, rtol=1e-5)

    print("KERNEL_OK")
</pallas_src>

<mosaic_0001>
module attributes {stable_mosaic.version = 11 : i64} {
  func.func @_select_kernel(%arg0: i32, %arg1: memref<8x1xf32, #tpu.memory_space<vmem>>, %arg2: memref<1x32xf32, #tpu.memory_space<vmem>>, %arg3: memref<1x32xi32, #tpu.memory_space<vmem>>, %arg4: memref<8x32xf32, #tpu.memory_space<vmem>>) attributes {dimension_semantics = [#tpu.dimension_semantics<parallel>], iteration_bounds = array<i64: 1>, scalar_prefetch = 0 : i64, scratch_operands = 0 : i64, tpu.core_type = #tpu.core_type<tc>, window_params = [{transform_indices = @transform_0, window_bounds = array<i64: 8, 1>}, {pipeline_mode = #tpu.pipeline_mode<synchronous>, transform_indices = @transform_1, window_bounds = array<i64: 1, 32>}, {pipeline_mode = #tpu.pipeline_mode<synchronous>, transform_indices = @transform_2, window_bounds = array<i64: 1, 32>}, {transform_indices = @transform_3, window_bounds = array<i64: 8, 32>}]} {
    %c0 = arith.constant 0 : index
    %c0_0 = arith.constant 0 : index
    %0 = vector.load %arg1[%c0, %c0_0] : memref<8x1xf32, #tpu.memory_space<vmem>>, vector<8x1xf32>
    %c0_1 = arith.constant 0 : index
    %c0_2 = arith.constant 0 : index
    %1 = vector.load %arg2[%c0_1, %c0_2] : memref<1x32xf32, #tpu.memory_space<vmem>>, vector<1x32xf32>
    %2 = vector.broadcast %0 : vector<8x1xf32> to vector<8x32xf32>
    %3 = vector.broadcast %1 : vector<1x32xf32> to vector<8x32xf32>
    %4 = arith.mulf %2, %3 : vector<8x32xf32>
    %c0_3 = arith.constant 0 : index
    %c0_4 = arith.constant 0 : index
    %5 = vector.load %arg3[%c0_3, %c0_4] : memref<1x32xi32, #tpu.memory_space<vmem>>, vector<1x32xi32>
    %c0_i32 = arith.constant 0 : i32
    %6 = vector.broadcast %c0_i32 : i32 to vector<1x32xi32>
    %7 = arith.cmpi ne, %5, %6 : vector<1x32xi32>
    %8 = math.cos %4 : vector<8x32xf32>
    %9 = math.sin %4 : vector<8x32xf32>
    %10 = vector.shape_cast %7 : vector<1x32xi1> to vector<1x32xi1>
    %11 = vector.broadcast %10 : vector<1x32xi1> to vector<8x32xi1>
    %12 = arith.select %11, %8, %9 : vector<8x32xi1>, vector<8x32xf32>
    %c0_5 = arith.constant 0 : index
    %c0_6 = arith.constant 0 : index
    %13 = vector.load %arg4[%c0_5, %c0_6] : memref<8x32xf32, #tpu.memory_space<vmem>>, vector<8x32xf32>
    tpu.vector_store %arg4[%c0_5, %c0_6], %12 {strides = array<i32>} : memref<8x32xf32, #tpu.memory_space<vmem>>, vector<8x32xf32>,
    return
  }
  func.func @transform_0(%arg0: i32) -> (i32, i32) {
    %c0_i32 = arith.constant 0 : i32
    %c0_i32_0 = arith.constant 0 : i32
    return %arg0, %c0_i32 : i32, i32
  }
  func.func @transform_1(%arg0: i32) -> (i32, i32) {
    %c0_i32 = arith.constant 0 : i32
    %c0_i32_0 = arith.constant 0 : i32
    %c0_i32_1 = arith.constant 0 : i32
    return %c0_i32, %c0_i32_0 : i32, i32
  }
  func.func @transform_2(%arg0: i32) -> (i32, i32) {
    %c0_i32 = arith.constant 0 : i32
    %c0_i32_0 = arith.constant 0 : i32
    %c0_i32_1 = arith.constant 0 : i32
    return %c0_i32, %c0_i32_0 : i32, i32
  }
  func.func @transform_3(%arg0: i32) -> (i32, i32) {
    %c0_i32 = arith.constant 0 : i32
    %c0_i32_0 = arith.constant 0 : i32
    return %arg0, %c0_i32 : i32, i32
  }
}

</mosaic_0001>

<llo_original>
// kernel: tpu_custom_call.1
$region0: #{tpu_custom_call.1}
  #allocation0 [shape = 'u32[]', space=smem, size = 0x4, offset = 0x4, fixed_abs, tag = 'smem constant byte address 0x4 - core index']
  #allocation1 [shape = 'u32[144,128]{1,0:T(1,128)}', space=vmem, size = 0x12000, scoped, tag = 'internal scratch']
  %s0 = inlined_call_operand.vmem [shape: f32[8,1], index: 0, kind: input, shape index: {}]
  %s1 = inlined_call_operand.vmem [shape: f32[1,32], index: 1, kind: input, shape index: {}]
  %s2 = inlined_call_operand.vmem [shape: s32[1,32], index: 2, kind: input, shape index: {}]
  %s3 = inlined_call_operand.hbm [shape: f32[8,32], index: 3, kind: output, shape index: {}]
  %s4 = sld [smem:[#allocation0]]
  $region22: #{tpu_custom_call.1} parent=0
    _
  %s6 = ssub.s32 1, %s4
  %s7 = scalar_select 0, %s6, %s4
  $region1: #{tpu_custom_call.1} parent=0
    #allocation2 [shape = 'u8[4096]{0}', space=vmem, size = 0x1000, scoped, tag = 'output window, operand 0, single buffered']
    #allocation3 [shape = 's32[1]{0}', space=sflag, size = 0x4, scoped, tag = 'scoped memory for tpu_custom_call.1']
    %8 = vsyncpa [#allocation3], 0
    // Predicated region
    $region2: #{tpu_custom_call.1} parent=1 // pred_check
      _
    $region3: #{tpu_custom_call.1} parent=1 // pred_check_branch
      %10 = sbr.rel (0) target = $region5
    $region4: #{tpu_custom_call.1} parent=1 // pred_region
      _
    $region5: #{tpu_custom_call.1} parent=1 // pred_fallthru
      _
    // Predicated region
    $region6: #{tpu_custom_call.1} parent=1 // pred_check
      _
    $region7: #{tpu_custom_call.1} parent=1 // pred_check_branch
      %12 = sbr.rel (0) target = $region9
    $region8: #{tpu_custom_call.1} parent=1 // pred_region
      _
    $region9: #{tpu_custom_call.1} parent=1 // pred_fallthru
      _
    // Predicated region
    $region10: #{tpu_custom_call.1} parent=1 // pred_check
      _
    $region11: #{tpu_custom_call.1} parent=1 // pred_check_branch
      %14 = sbr.rel (0) target = $region13
    $region12: #{tpu_custom_call.1} parent=1 // pred_region
      _
    $region13: #{tpu_custom_call.1} parent=1 // pred_fallthru
      _
    %v15 = vld [vmem:[%s0] sm:$0xff]
    %v16 = vld [vmem:[%s1] sm:$0x1]
    %18 = vset.pattern.permute.xlu0 0
    %19 = vperm.xlu0 %18, %v15
    %v20 = vpop.permute.xlu0 %19
    %v23 = vlaneseq
    %v24 = vshrl.u32 %v23, 7
    %v25 = vsub.s32 0, %v24
    %v26 = vrot.slane %v16, %v25
    %v28 = vmul.f32 %v20, %v26
    %v29 = vld [vmem:[%s2] sm:$0x1]
    %vm30 = vcmp.ne.s32.totalorder %v29, 0
    %v31 = vand.u32 2147483647, %v28
    %vm32 = vcmp.le.f32.partialorder %v31, 0.7853982
    %vm33 = vcmp.lt.s32.totalorder %v28, 0
    %v34 = vand.u32 %v28, 2139095040
    %v35 = vshrl.u32 %v34, 23
    %v36 = vsub.s32 %v35, 127
    %v37 = vand.u32 2147483647, %v28
    %v38 = vand.u32 %v37, 8388607
    %v39 = vor.u32 %v38, 8388608
    %v40 = vsub.s32 0, %v39
    %v41 = vadd.s32 %v36, 1
    %vm42 = vcmp.gt.s32.totalorder %v41, 0
    %v43 = vsel %vm42, %v41, 0
    %v44 = vshrl.u32 %v43, 5
    %v45 = vand.u32 %v43, 31
    %v46 = vsub.s32 32, %v45
    %v47 = vshrl.u32 683565275, %v46
    %v48 = vshll.u32 683565275, %v45
    %v49 = vshrl.u32 2475754826, %v46
    %v50 = vor.u32 %v48, %v49
    %v51 = vshll.u32 2475754826, %v45
    %v52 = vshrl.u32 2131351028, %v46
    %v53 = vor.u32 %v51, %v52
    %v54 = vshll.u32 2131351028, %v45
    %v55 = vshrl.u32 2102212464, %v46
    %v56 = vor.u32 %v54, %v55
    %v57 = vshll.u32 2102212464, %v45
    %v58 = vshrl.u32 920167782, %v46
    %v59 = vor.u32 %v57, %v58
    %v60 = vshll.u32 920167782, %v45
    %v61 = vshrl.u32 1326507024, %v46
    %v62 = vor.u32 %v60, %v61
    %vm63 = vcmp.lt.s32.totalorder %v44, 1
    %vm64 = vcmp.lt.s32.totalorder %v44, 2
    %vm65 = vcmp.lt.s32.totalorder %v44, 3
    %vm66 = vcmp.lt.s32.totalorder %v44, 4
    %v67 = vsel %vm63, %v47, %v50
    %v68 = vsel %vm66, %v56, 2102212464
    %v69 = vsel %vm65, %v53, %v68
    %v70 = vsel %vm64, %v67, %v69
    %v71 = vsel %vm63, %v50, %v53
    %v72 = vsel %vm66, %v59, 920167782
    %v73 = vsel %vm65, %v56, %v72
    %v74 = vsel %vm64, %v71, %v73
    %v75 = vsel %vm63, %v53, %v56
    %v76 = vsel %vm66, %v62, 1326507024
    %v77 = vsel %vm65, %v59, %v76
    %v78 = vsel %vm64, %v75, %v77
    %v79 = vshll.u32 %v39, 8
    %v80 = vmul.u32.u64.compose %v79, %v78
    %v81 = vextract.low.u32 %v80
    %v82 = vextract.high.u32 %v80
    %v83 = vmul.u32.u64.compose %v79, %v74
    %v84 = vextract.low.u32 %v83
    %v85 = vextract.high.u32 %v83
    %v86 = vmul.u32 %v79, %v70
    %v87 = vadd.s32 %v82, %v84
    %vm88 = vc.u32 %v82, %v84
    %v89 = vadd.s32 %v85, 1
    %v90 = vsel %vm88, %v89, %v85
    %v91 = vadd.s32 %v86, %v90
    %v92 = vadd.s32 %v91, 536870912
    %v93 = vshrl.u32 %v92, 30
    %v94 = vshll.u32 %v93, 30
    %v95 = vsub.s32 %v91, %v94
    %vm96 = vcmp.lt.s32.totalorder %v95, 0
    %v97 = vsub.s32 0, %v95
    %v98 = vsel %vm96, %v97, %v95
    %v99 = vclz %v98
    %v100 = vsub.s32 %v99, 2
    %vm101 = vcmp.gt.s32.totalorder 0, %v100
    %v102 = vsel %vm101, 0, %v100
    %v103 = vsub.s32 32, %v102
    %v104 = vshll.u32 %v95, %v102
    %v105 = vshrl.u32 %v87, %v103
    %v106 = vor.u32 %v104, %v105
    %v107 = vsub.s32 4294967266, %v102
    %v108 = vadd.s32 %v107, 127
    %v109 = vshll.u32 %v108, 23
    %v110 = vor.u32 4788187, %v109
    %v111 = vand.u32 2147483647, %v110
    %v113 = vcvt.s32.f32 %v106
    %v114 = vmul.f32 %v113, %v111
    %v115 = vxor.u32 %v114, 2147483648
    %v116 = vsel %vm33, %v115, %v114
    %v117 = vsub.s32 4, %v93
    %v118 = vsel %vm33, %v117, %v93
    %v119 = vsel %vm32, %v28, %v116
    %v120 = vsel %vm32, 0, %v118
    %v121 = vcosq.f32.pop %v119
    %v122 = vsinq.f32.pop %v119
    %vm123 = vweird.f32 %v28
    %v124 = vand.u32 %v120, 3
    %vm125 = vcmp.lt.s32.totalorder %v124, 2
    %vm126 = vcmp.eq.s32.totalorder %v124, 0
    %v127 = vxor.u32 %v122, 2147483648
    %v128 = vsel %vm126, %v121, %v127
    %vm129 = vcmp.eq.s32.totalorder %v124, 2
    %v130 = vxor.u32 %v121, 2147483648
    %v131 = vsel %vm129, %v130, %v122
    %v132 = vsel %vm125, %v128, %v131
    %v133 = vsel %vm123, nan, %v132
    %v134 = vand.u32 2147483647, %v28
    %vm135 = vcmp.le.f32.partialorder %v134, 0.7853982
    %vm136 = vcmp.lt.s32.totalorder %v28, 0
    %v137 = vand.u32 %v28, 2139095040
    %v138 = vshrl.u32 %v137, 23
    %v139 = vsub.s32 %v138, 127
    %v140 = vand.u32 2147483647, %v28
    %v141 = vand.u32 %v140, 8388607
    %v142 = vor.u32 %v141, 8388608
    %v143 = vsub.s32 0, %v142
    %v144 = vadd.s32 %v139, 1
    %vm145 = vcmp.gt.s32.totalorder %v144, 0
    %v146 = vsel %vm145, %v144, 0
    %v147 = vshrl.u32 %v146, 5
    %v148 = vand.u32 %v146, 31
    %v149 = vsub.s32 32, %v148
    %v150 = vshrl.u32 683565275, %v149
    %v151 = vshll.u32 683565275, %v148
    %v152 = vshrl.u32 2475754826, %v149
    %v153 = vor.u32 %v151, %v152
    %v154 = vshll.u32 2475754826, %v148
    %v155 = vshrl.u32 2131351028, %v149
    %v156 = vor.u32 %v154, %v155
    %v157 = vshll.u32 2131351028, %v148
    %v158 = vshrl.u32 2102212464, %v149
    %v159 = vor.u32 %v157, %v158
    %v160 = vshll.u32 2102212464, %v148
    %v161 = vshrl.u32 920167782, %v149
    %v162 = vor.u32 %v160, %v161
    %v163 = vshll.u32 920167782, %v148
    %v164 = vshrl.u32 1326507024, %v149
    %v165 = vor.u32 %v163, %v164
    %vm166 = vcmp.lt.s32.totalorder %v147, 1
    %vm167 = vcmp.lt.s32.totalorder %v147, 2
    %vm168 = vcmp.lt.s32.totalorder %v147, 3
    %vm169 = vcmp.lt.s32.totalorder %v147, 4
    %v170 = vsel %vm166, %v150, %v153
    %v171 = vsel %vm169, %v159, 2102212464
    %v172 = vsel %vm168, %v156, %v171
    %v173 = vsel %vm167, %v170, %v172
    %v174 = vsel %vm166, %v153, %v156
    %v175 = vsel %vm169, %v162, 920167782
    %v176 = vsel %vm168, %v159, %v175
    %v177 = vsel %vm167, %v174, %v176
    %v178 = vsel %vm166, %v156, %v159
    %v179 = vsel %vm169, %v165, 1326507024
    %v180 = vsel %vm168, %v162, %v179
    %v181 = vsel %vm167, %v178, %v180
    %v182 = vshll.u32 %v142, 8
    %v183 = vmul.u32.u64.compose %v182, %v181
    %v184 = vextract.low.u32 %v183
    %v185 = vextract.high.u32 %v183
    %v186 = vmul.u32.u64.compose %v182, %v177
    %v187 = vextract.low.u32 %v186
    %v188 = vextract.high.u32 %v186
    %v189 = vmul.u32 %v182, %v173
    %v190 = vadd.s32 %v185, %v187
    %vm191 = vc.u32 %v185, %v187
    %v192 = vadd.s32 %v188, 1
    %v193 = vsel %vm191, %v192, %v188
    %v194 = vadd.s32 %v189, %v193
    %v195 = vadd.s32 %v194, 536870912
    %v196 = vshrl.u32 %v195, 30
    %v197 = vshll.u32 %v196, 30
    %v198 = vsub.s32 %v194, %v197
    %vm199 = vcmp.lt.s32.totalorder %v198, 0
    %v200 = vsub.s32 0, %v198
    %v201 = vsel %vm199, %v200, %v198
    %v202 = vclz %v201
    %v203 = vsub.s32 %v202, 2
    %vm204 = vcmp.gt.s32.totalorder 0, %v203
    %v205 = vsel %vm204, 0, %v203
    %v206 = vsub.s32 32, %v205
    %v207 = vshll.u32 %v198, %v205
    %v208 = vshrl.u32 %v190, %v206
    %v209 = vor.u32 %v207, %v208
    %v210 = vsub.s32 4294967266, %v205
    %v211 = vadd.s32 %v210, 127
    %v212 = vshll.u32 %v211, 23
    %v213 = vor.u32 4788187, %v212
    %v214 = vand.u32 2147483647, %v213
    %v216 = vcvt.s32.f32 %v209
    %v217 = vmul.f32 %v216, %v214
    %v218 = vxor.u32 %v217, 2147483648
    %v219 = vsel %vm136, %v218, %v217
    %v220 = vsub.s32 4, %v196
    %v221 = vsel %vm136, %v220, %v196
    %v222 = vsel %vm135, %v28, %v219
    %v223 = vsel %vm135, 0, %v221
    %v224 = vcosq.f32.pop %v222
    %v225 = vsinq.f32.pop %v222
    %vm226 = vweird.f32 %v28
    %v227 = vadd.s32 %v223, 3
    %v228 = vand.u32 %v227, 3
    %vm229 = vcmp.lt.s32.totalorder %v228, 2
    %vm230 = vcmp.eq.s32.totalorder %v228, 0
    %v231 = vxor.u32 %v225, 2147483648
    %v232 = vsel %vm230, %v224, %v231
    %vm233 = vcmp.eq.s32.totalorder %v228, 2
    %v234 = vxor.u32 %v224, 2147483648
    %v235 = vsel %vm233, %v234, %v225
    %v236 = vsel %vm229, %v232, %v235
    %v237 = vsel %vm226, nan, %v236
    %v238 = vsel %vm30, 1, 0
    %v239 = vlaneseq
    %v240 = vshrl.u32 %v239, 7
    %v241 = vsub.s32 0, %v240
    %v242 = vrot.slane %v238, %v241
    %vm243 = vcmp.eq.s32.totalorder %v242, 1
    %v244 = vsel %vm243, %v133, %v237
    %vm245 = vcmask 261120
    %246 = vst.msk [vmem:[#allocation2] sm:$0xff] %vm245, %v244
    // Predicated region
    $region14: #{tpu_custom_call.1} parent=1 // pred_check
      _
    $region15: #{tpu_custom_call.1} parent=1 // pred_check_branch
      %248 = sbr.rel (0) target = $region17
    $region16: #{tpu_custom_call.1} parent=1 // pred_region
      %s250 = ssub.s32 128, 128
      %251 = vsyncadd [#allocation3], %s250
      %s253 = sshll.u32 [#allocation2], 4
      %s254 = int_to_ptr.vmem [resolvable:$true] %s253
      %256 = dma.vmem_to_hbm [thread:$0]  %s254, 128, %s3, [#allocation3]
    $region17: #{tpu_custom_call.1} parent=1 // pred_fallthru
      _
    // Predicated region
    $region18: #{tpu_custom_call.1} parent=1 // pred_check
      _
    $region19: #{tpu_custom_call.1} parent=1 // pred_check_branch
      %258 = sbr.rel (0) target = $region21
    $region20: #{tpu_custom_call.1} parent=1 // pred_region
      %259 = dma.done [#allocation3], 128
    $region21: #{tpu_custom_call.1} parent=1 // pred_fallthru
      _
    %260 = vsyncpa [#allocation3], 1

</llo_original>
